<compile_context>
chip_gen: v7x
topology: tpu7x:2x2x1
jax: 0.10.0
libtpu: 0.0.40
codegen_flags: <defaults>
</compile_context>

<pallas_src>
import functools

import jax
import jax.numpy as jnp
from jax import lax
from jax.experimental import pallas as pl
from jax.experimental.pallas import tpu as pltpu


def _bce_partial_kernel(x_ref, y_ref, o_ref, *, rows_total, tile_rows, ragged):
    # x_ref / y_ref: (tile_rows, L) channel-0 tile in native dtype.
    x = x_ref[...].astype(jnp.float32)
    y = y_ref[...].astype(jnp.float32)
    # PyTorch F.binary_cross_entropy clamps each log term at -100.
    log_x = jnp.maximum(jnp.log(x), -100.0)
    log_1mx = jnp.maximum(jnp.log(1.0 - x), -100.0)
    # -(y*log(x) + (1-y)*log(1-x)) == -(log(1-x) + y*(log(x) - log(1-x)))
    # (one fewer VPU multiply per element).
    bce = -(log_1mx + y * (log_x - log_1mx))
    if ragged:
        # The last row-tile extends past the array; the padded rows' DMA'd
        # contents are unspecified (may become NaN/Inf after the logs), so
        # zero them before the reduction.
        r = pl.program_id(1)
        row_ids = r * tile_rows + lax.broadcasted_iota(jnp.int32, bce.shape, 0)
        bce = jnp.where(row_ids < rows_total, bce, 0.0)
    # One partial sum per grid step (XLU reduce rides the otherwise-idle XLU
    # slot), broadcast into the (8,128) output slab -> unmasked store, and each
    # grid step writes a distinct block (prerequisite for "parallel" axes).
    o_ref[...] = jnp.full(o_ref.shape, jnp.sum(bce), dtype=o_ref.dtype)


def _choose_tile_rows(R, L):
    """Largest row-tile that keeps one f32 tile (kernel temporaries are f32)
    around ~1 MiB, is a multiple of 8 sublanes, and never exceeds VMEM limits
    on any generation.  Full extent R is always a legal fallback."""
    target = max(8, (1024 * 1024) // (L * 4))
    target -= target % 8
    target = max(8, target)
    if R <= target:
        return R  # full extent: always a legal BlockSpec shape
    return target


def lung_bce_loss(output, label0):
    """Pallas equivalent of:
        F.binary_cross_entropy(output[:, 0, :, :].unsqueeze(1), label[0])
    output: (B, C, H, W) probabilities in (0, 1)
    label0: (B, 1, H, W) targets in [0, 1]   (i.e. `label[0]` in the module)
    returns scalar f32 mean BCE over channel 0.
    """
    B, C, H, W = output.shape
    assert label0.shape == (B, 1, H, W)
    total_elems = B * H * W

    # Lane-dense view of the channel plane when possible (free contiguous
    # reshape); otherwise keep (H, W) with W as the (possibly <128) lane dim.
    if (H * W) % 128 == 0:
        L = 128
        R = (H * W) // 128
        x = output.reshape(B, C, R, L)
        y = label0.reshape(B, 1, R, L)
    else:
        L, R = W, H
        x, y = output, label0

    tile_rows = _choose_tile_rows(R, L)
    n_r = -(-R // tile_rows)
    ragged = (R % tile_rows) != 0

    kernel = functools.partial(_bce_partial_kernel, rows_total=R,
                               tile_rows=tile_rows, ragged=ragged)

    in_bytes = total_elems * (jnp.dtype(output.dtype).itemsize
                              + jnp.dtype(label0.dtype).itemsize)
    cost = pl.CostEstimate(
        flops=5 * total_elems,
        transcendentals=2 * total_elems,
        bytes_accessed=in_bytes + B * n_r * 8 * 128 * 4,
    )

    partials = pl.pallas_call(
        kernel,
        out_shape=jax.ShapeDtypeStruct((B, n_r, 8, 128), jnp.float32),
        grid_spec=pltpu.PrefetchScalarGridSpec(
            num_scalar_prefetch=0,
            grid=(B, n_r),
            in_specs=[
                # Channel-0 slice folded into the BlockSpec (channel pinned to
                # 0, squeezed) -> kernel sees a (tile_rows, L) tile.
                pl.BlockSpec((None, None, tile_rows, L),
                             lambda b, r: (b, 0, r, 0)),
                pl.BlockSpec((None, None, tile_rows, L),
                             lambda b, r: (b, 0, r, 0)),
            ],
            out_specs=pl.BlockSpec((None, None, 8, 128),
                                   lambda b, r: (b, r, 0, 0)),
        ),
        compiler_params=pltpu.CompilerParams(
            # Partial-sum outputs make both axes independent -> shard across
            # both TensorCores on v7x; harmless on single-TC v5e/v6e.
            dimension_semantics=("parallel", "parallel"),
            vmem_limit_bytes=32 * 1024 * 1024,
        ),
        cost_estimate=cost,
    )(x, y)

    # Tiny final reduction (B * n_r scalars) in plain jnp.
    return jnp.sum(partials[:, :, 0, 0]) / jnp.float32(total_elems)


def _reference(output, label0):
    x = output[:, 0, :, :].astype(jnp.float32)
    y = label0[:, 0, :, :].astype(jnp.float32)
    log_x = jnp.maximum(jnp.log(x), -100.0)
    log_1mx = jnp.maximum(jnp.log(1.0 - x), -100.0)
    return jnp.mean(-(y * log_x + (1.0 - y) * log_1mx))


if __name__ == "__main__":
    key = jax.random.PRNGKey(0)
    k1, k2 = jax.random.split(key)
    B, C, H, W = 2, 4, 16, 16
    # `output` must be probabilities in (0, 1) for BCE (as in PyTorch usage).
    output = jax.nn.sigmoid(jax.random.normal(k1, (B, C, H, W), jnp.float32))
    label0 = jax.random.uniform(k2, (B, 1, H, W), jnp.float32)

    loss = lung_bce_loss(output, label0)
    jax.block_until_ready(loss)

    ref = _reference(output, label0)
    assert jnp.allclose(loss, ref, rtol=1e-5, atol=1e-6), (loss, ref)
    print("KERNEL_OK")
</pallas_src>

<mosaic_0001>
module attributes {stable_mosaic.version = 11 : i64} {
  func.func @_bce_partial_kernel(%arg0: i32, %arg1: i32, %arg2: memref<1x1x2x128xf32, #tpu.memory_space<vmem>>, %arg3: memref<1x1x2x128xf32, #tpu.memory_space<vmem>>, %arg4: memref<1x1x8x128xf32, #tpu.memory_space<vmem>>) attributes {dimension_semantics = [#tpu.dimension_semantics<parallel>, #tpu.dimension_semantics<parallel>], iteration_bounds = array<i64: 2, 1>, scalar_prefetch = 0 : i64, scratch_operands = 0 : i64, tpu.core_type = #tpu.core_type<tc>, window_params = [{transform_indices = @transform_0, window_bounds = array<i64: 1, 1, 2, 128>}, {transform_indices = @transform_1, window_bounds = array<i64: 1, 1, 2, 128>}, {transform_indices = @transform_2, window_bounds = array<i64: 1, 1, 8, 128>}]} {
    %c0 = arith.constant 0 : index
    %c0_0 = arith.constant 0 : index
    %c0_1 = arith.constant 0 : index
    %c0_2 = arith.constant 0 : index
    %0 = vector.load %arg2[%c0, %c0_0, %c0_1, %c0_2] : memref<1x1x2x128xf32, #tpu.memory_space<vmem>>, vector<1x1x2x128xf32>
    %1 = vector.shape_cast %0 : vector<1x1x2x128xf32> to vector<2x128xf32>
    %c0_3 = arith.constant 0 : index
    %c0_4 = arith.constant 0 : index
    %c0_5 = arith.constant 0 : index
    %c0_6 = arith.constant 0 : index
    %2 = vector.load %arg3[%c0_3, %c0_4, %c0_5, %c0_6] : memref<1x1x2x128xf32, #tpu.memory_space<vmem>>, vector<1x1x2x128xf32>
    %3 = vector.shape_cast %2 : vector<1x1x2x128xf32> to vector<2x128xf32>
    %4 = math.log %1 : vector<2x128xf32>
    %cst = arith.constant -1.000000e+02 : f32
    %5 = vector.broadcast %cst : f32 to vector<2x128xf32>
    %6 = arith.maximumf %4, %5 : vector<2x128xf32>
    %cst_7 = arith.constant 1.000000e+00 : f32
    %7 = vector.broadcast %cst_7 : f32 to vector<2x128xf32>
    %8 = arith.subf %7, %1 : vector<2x128xf32>
    %9 = math.log %8 : vector<2x128xf32>
    %cst_8 = arith.constant -1.000000e+02 : f32
    %10 = vector.broadcast %cst_8 : f32 to vector<2x128xf32>
    %11 = arith.maximumf %9, %10 : vector<2x128xf32>
    %12 = arith.subf %6, %11 : vector<2x128xf32>
    %13 = arith.mulf %3, %12 : vector<2x128xf32>
    %14 = arith.addf %11, %13 : vector<2x128xf32>
    %cst_9 = arith.constant 0.000000e+00 : f32
    %15 = vector.broadcast %cst_9 : f32 to vector<2x128xf32>
    %16 = arith.subf %15, %14 : vector<2x128xf32>
    %17 = vector.shape_cast %16 : vector<2x128xf32> to vector<1x2x128xf32>
    %cst_10 = arith.constant dense<0.000000e+00> : vector<1xf32>
    %18 = vector.multi_reduction <add>, %17, %cst_10 [1, 2] : vector<1x2x128xf32> to vector<1xf32>
    %19 = vector.shape_cast %18 : vector<1xf32> to vector<1x1x1xf32>
    %20 = vector.extract %19[0, 0, 0] : f32 from vector<1x1x1xf32>
    %21 = vector.broadcast %20 : f32 to vector<8x128xf32>
    %c0_11 = arith.constant 0 : index
    %c0_12 = arith.constant 0 : index
    %c0_13 = arith.constant 0 : index
    %c0_14 = arith.constant 0 : index
    %22 = vector.load %arg4[%c0_11, %c0_12, %c0_13, %c0_14] : memref<1x1x8x128xf32, #tpu.memory_space<vmem>>, vector<1x1x8x128xf32>
    %23 = vector.shape_cast %22 : vector<1x1x8x128xf32> to vector<8x128xf32>
    %24 = vector.shape_cast %21 : vector<8x128xf32> to vector<1x1x8x128xf32>
    tpu.vector_store %arg4[%c0_11, %c0_12, %c0_13, %c0_14], %24 {strides = array<i32>} : memref<1x1x8x128xf32, #tpu.memory_space<vmem>>, vector<1x1x8x128xf32>,
    return
  }
  func.func @transform_0(%arg0: i32, %arg1: i32) -> (i32, i32, i32, i32) {
    %c0_i32 = arith.constant 0 : i32
    %c0_i32_0 = arith.constant 0 : i32
    %c0_i32_1 = arith.constant 0 : i32
    return %arg0, %c0_i32, %arg1, %c0_i32_0 : i32, i32, i32, i32
  }
  func.func @transform_1(%arg0: i32, %arg1: i32) -> (i32, i32, i32, i32) {
    %c0_i32 = arith.constant 0 : i32
    %c0_i32_0 = arith.constant 0 : i32
    %c0_i32_1 = arith.constant 0 : i32
    return %arg0, %c0_i32, %arg1, %c0_i32_0 : i32, i32, i32, i32
  }
  func.func @transform_2(%arg0: i32, %arg1: i32) -> (i32, i32, i32, i32) {
    %c0_i32 = arith.constant 0 : i32
    %c0_i32_0 = arith.constant 0 : i32
    %c0_i32_1 = arith.constant 0 : i32
    return %arg0, %arg1, %c0_i32, %c0_i32_0 : i32, i32, i32, i32
  }
}

</mosaic_0001>

<llo_original>
// kernel: tpu_custom_call.1
$region0: #{tpu_custom_call.1}
  #allocation0 [shape = 'u32[]', space=smem, size = 0x4, offset = 0x4, fixed_abs, tag = 'smem constant byte address 0x4 - core index']
  #allocation1 [shape = 'u32[144,128]{1,0:T(1,128)}', space=vmem, size = 0x12000, scoped, tag = 'internal scratch']
  %s0 = inlined_call_operand.hbm [shape: f32[2,4,2,128], index: 0, kind: input, shape index: {}]
  %s1 = inlined_call_operand.hbm [shape: f32[2,1,2,128], index: 1, kind: input, shape index: {}]
  %s2 = inlined_call_operand.hbm [shape: f32[2,1,8,128], index: 2, kind: output, shape index: {}]
  %s3 = sld [smem:[#allocation0]]
  $region49: #{tpu_custom_call.1} parent=0
    _
  %s5 = ssub.s32 1, %s3
  %s6 = scalar_select 0, %s5, %s3
  $region1: #{tpu_custom_call.1} parent=0
    #allocation2 [shape = 'u8[2048]{0}', space=vmem, size = 0x800, scoped, tag = 'input window, operand 0']
    #allocation3 [shape = 's32[2]{0}', space=sflag, size = 0x8, scoped, tag = 'scoped memory for tpu_custom_call.1']
    #allocation4 [shape = 's32[2]{0}', space=sflag, size = 0x8, scoped, tag = 'scoped memory for tpu_custom_call.1']
    #allocation5 [shape = 'u8[2048]{0}', space=vmem, size = 0x800, scoped, tag = 'input window, operand 1']
    #allocation6 [shape = 's32[2]{0}', space=sflag, size = 0x8, scoped, tag = 'scoped memory for tpu_custom_call.1']
    #allocation7 [shape = 'u8[8192]{0}', space=vmem, size = 0x2000, scoped, tag = 'output window, operand 0']
    %7 = vsyncpa [#allocation3], 0
    %s8 = scalar_lea.sflag [#allocation3], 1
    %9 = vsyncpa %s8, 0
    %10 = vsyncpa [#allocation6], 0
    %s11 = scalar_lea.sflag [#allocation6], 1
    %12 = vsyncpa %s11, 0
    %13 = vsyncpa [#allocation4], 0
    %s14 = scalar_lea.sflag [#allocation4], 1
    %15 = vsyncpa %s14, 0
    loop: start=0, step=1, limit=4
    $region2: #{tpu_custom_call.1} parent=1 // loop_pre_header
      _
    $region3: #{tpu_custom_call.1} parent=1 // loop_header
      %s17 = sphi 0, %s21
      %p18 = scmp.ge.s32.totalorder %s17, 4
      %s24 = sphi 0, %s36
      %s25 = sphi 0, %s32
      %s26 = sphi 0, %s24
      %s27 = sphi 0, %s25
      %s28 = sphi 0, %s26
      %s29 = sphi 0, %s27
      %s41 = sphi 0, %s43
      %s44 = sphi 0, %s41
      %s45 = sphi 0, %s44
      %s61 = sphi 0, %s45
      %s69 = sphi 0, %s71
      %s72 = sphi 0, %s69
      %s73 = sphi 0, %s72
      %s89 = sphi 0, %s73
      %s97 = sphi 0, %s99
      %s100 = sphi 0, %s97
      %s101 = sphi 0, %s100
      %s117 = sphi 0, %s101
    $region4: #{tpu_custom_call.1} parent=1 // loop_header_branch
      %20 = sbr.rel (%p18) target = $region8
    $region5: #{tpu_custom_call.1} parent=1 // loop_body
      %s22 = ssub.s32 %s17, 1
      %s23 = ssub.s32 %s17, 2
      %s30 = sadd.s32 1, %s25
      %p31 = scmp.ge.s32.totalorder %s30, 1
      %s32 = scalar_select %p31, 0, %s30
      %s33 = sadd.s32 1, %s24
      %s34 = scalar_select %p31, %s33, %s24
      %p35 = scmp.ge.s32.totalorder %s34, 2
      %s36 = scalar_select %p35, 0, %s34
      %s37 = ssub.s32 %s24, %s36
      %s38 = ssub.s32 %s25, %s32
      %s39 = sor.u32 %s37, %s38
      %p40 = scmp.eq.s32.totalorder %s39, 0
      %s42 = sadd.s32 %s41, 1
      %s43 = scalar_select %p40, %s41, %s42
      %p46 = pneg %p40
      %p47 = scmp.eq.s32.totalorder %s17, 1
      %p48 = por %p46, %p47
      %p49 = scmp.ne.s32.totalorder %s41, %s44
      %p50 = scmp.eq.s32.totalorder %s17, 0
      %p51 = por %p49, %p50
      %p52 = scmp.ne.s32.totalorder %s41, %s44
      %p53 = scmp.eq.s32.totalorder %s22, 1
      %p54 = por %p52, %p53
      %p55 = scmp.ne.s32.totalorder %s44, %s45
      %p56 = scmp.eq.s32.totalorder %s22, 0
      %p57 = por %p55, %p56
      %p58 = scmp.ne.s32.totalorder %s44, %s45
      %p59 = scmp.eq.s32.totalorder %s23, 1
      %p60 = por %p58, %p59
      %p62 = scmp.ne.s32.totalorder %s45, %s61
      %p63 = scmp.eq.s32.totalorder %s23, 0
      %p64 = por %p62, %p63
      %s65 = ssub.s32 %s24, %s36
      %s66 = ssub.s32 %s25, %s32
      %s67 = sor.u32 %s65, %s66
      %p68 = scmp.eq.s32.totalorder %s67, 0
      %s70 = sadd.s32 %s69, 1
      %s71 = scalar_select %p68, %s69, %s70
      %p74 = pneg %p68
      %p75 = scmp.eq.s32.totalorder %s17, 1
      %p76 = por %p74, %p75
      %p77 = scmp.ne.s32.totalorder %s69, %s72
      %p78 = scmp.eq.s32.totalorder %s17, 0
      %p79 = por %p77, %p78
      %p80 = scmp.ne.s32.totalorder %s69, %s72
      %p81 = scmp.eq.s32.totalorder %s22, 1
      %p82 = por %p80, %p81
      %p83 = scmp.ne.s32.totalorder %s72, %s73
      %p84 = scmp.eq.s32.totalorder %s22, 0
      %p85 = por %p83, %p84
      %p86 = scmp.ne.s32.totalorder %s72, %s73
      %p87 = scmp.eq.s32.totalorder %s23, 1
      %p88 = por %p86, %p87
      %p90 = scmp.ne.s32.totalorder %s73, %s89
      %p91 = scmp.eq.s32.totalorder %s23, 0
      %p92 = por %p90, %p91
      %s93 = ssub.s32 %s24, %s36
      %s94 = ssub.s32 %s25, %s32
      %s95 = sor.u32 %s93, %s94
      %p96 = scmp.eq.s32.totalorder %s95, 0
      %s98 = sadd.s32 %s97, 1
      %s99 = scalar_select %p96, %s97, %s98
      %p102 = pneg %p96
      %p103 = scmp.eq.s32.totalorder %s17, 1
      %p104 = por %p102, %p103
      %p105 = scmp.ne.s32.totalorder %s97, %s100
      %p106 = scmp.eq.s32.totalorder %s17, 0
      %p107 = por %p105, %p106
      %p108 = scmp.ne.s32.totalorder %s97, %s100
      %p109 = scmp.eq.s32.totalorder %s22, 1
      %p110 = por %p108, %p109
      %p111 = scmp.ne.s32.totalorder %s100, %s101
      %p112 = scmp.eq.s32.totalorder %s22, 0
      %p113 = por %p111, %p112
      %p114 = scmp.ne.s32.totalorder %s100, %s101
      %p115 = scmp.eq.s32.totalorder %s23, 1
      %p116 = por %p114, %p115
      %p118 = scmp.ne.s32.totalorder %s101, %s117
      %p119 = scmp.eq.s32.totalorder %s23, 0
      %p120 = por %p118, %p119
      %p121 = scmp.le.s32.totalorder 1, %s17
      %p122 = scmp.lt.s32.totalorder %s17, 3
      %p123 = pnand %p121, %p122
      %p124 = pneg %p123
      // Predicated region
      $region9: #{tpu_custom_call.1} parent=5 // pred_check
        _
      $region10: #{tpu_custom_call.1} parent=5 // pred_check_branch
        %126 = sbr.rel (%p123) target = $region12
      $region11: #{tpu_custom_call.1} parent=5 // pred_region
        %s127 = ssub.s32 %s17, 1
      $region12: #{tpu_custom_call.1} parent=5 // pred_fallthru
        _
      %p128 = scmp.lt.s32.totalorder %s17, 2
      // Predicated region
      $region13: #{tpu_custom_call.1} parent=5 // pred_check
        %p129 = pneg %p128
      $region14: #{tpu_custom_call.1} parent=5 // pred_check_branch
        %131 = sbr.rel (%p129) target = $region16
      $region15: #{tpu_custom_call.1} parent=5 // pred_region
        // Predicated region
        $region17: #{tpu_custom_call.1} parent=15 // pred_check
          %p132 = pneg %p51
        $region18: #{tpu_custom_call.1} parent=15 // pred_check_branch
          %134 = sbr.rel (%p132) target = $region20
        $region19: #{tpu_custom_call.1} parent=15 // pred_region
          %s135 = sand.u32 %s41, 1
          %s136 = scalar_lea.sflag [#allocation3], %s135
          %s137 = sand.u32 %s41, 1
          %s138 = smul.addr %s137, 2
          %s139 = scalar_lea.vmem [#allocation2], %s138
          %s141 = ssub.s32 32, 32
          %142 = vsyncadd %s136, %s141
          %s143 = smul.addr %s24, 4
          %s144 = sadd.s32 %s25, %s143
          %s145 = smul.addr %s144, 32
          %s146 = scalar_lea.hbm %s0, %s145
          %s148 = sshll.u32 %s139, 4
          %s149 = int_to_ptr.vmem [resolvable:$true] %s148
          %151 = dma.hbm_to_vmem [thread:$0]  %s146, 32, %s149, %s136
        $region20: #{tpu_custom_call.1} parent=15 // pred_fallthru
          _
        // Predicated region
        $region21: #{tpu_custom_call.1} parent=15 // pred_check
          %p152 = pneg %p79
        $region22: #{tpu_custom_call.1} parent=15 // pred_check_branch
          %154 = sbr.rel (%p152) target = $region24
        $region23: #{tpu_custom_call.1} parent=15 // pred_region
          %s155 = sand.u32 %s69, 1
          %s156 = scalar_lea.sflag [#allocation6], %s155
          %s157 = sand.u32 %s69, 1
          %s158 = smul.addr %s157, 2
          %s159 = scalar_lea.vmem [#allocation5], %s158
          %s161 = ssub.s32 32, 32
          %162 = vsyncadd %s156, %s161
          %s163 = sadd.s32 %s25, %s24
          %s164 = smul.addr %s163, 32
          %s165 = scalar_lea.hbm %s1, %s164
          %s167 = sshll.u32 %s159, 4
          %s168 = int_to_ptr.vmem [resolvable:$true] %s167
          %170 = dma.hbm_to_vmem [thread:$0]  %s165, 32, %s168, %s156
        $region24: #{tpu_custom_call.1} parent=15 // pred_fallthru
          _
      $region16: #{tpu_custom_call.1} parent=5 // pred_fallthru
        _
      %p171 = scmp.le.s32.totalorder 1, %s17
      %p172 = scmp.lt.s32.totalorder %s17, 3
      %p173 = pnand %p171, %p172
      %p174 = pneg %p173
      // Predicated region
      $region25: #{tpu_custom_call.1} parent=5 // pred_check
        _
      $region26: #{tpu_custom_call.1} parent=5 // pred_check_branch
        %176 = sbr.rel (%p173) target = $region28
      $region27: #{tpu_custom_call.1} parent=5 // pred_region
        %s177 = ssub.s32 %s17, 1
        %s178 = sand.u32 %s44, 1
        %s179 = scalar_lea.sflag [#allocation3], %s178
        %s180 = sand.u32 %s44, 1
        %s181 = smul.addr %s180, 2
        %s182 = scalar_lea.vmem [#allocation2], %s181
        // Predicated region
        $region29: #{tpu_custom_call.1} parent=27 // pred_check
          %p183 = pneg %p57
        $region30: #{tpu_custom_call.1} parent=27 // pred_check_branch
          %185 = sbr.rel (%p183) target = $region32
        $region31: #{tpu_custom_call.1} parent=27 // pred_region
          %186 = dma.done %s179, 32
        $region32: #{tpu_custom_call.1} parent=27 // pred_fallthru
          _
        %s187 = sand.u32 %s72, 1
        %s188 = scalar_lea.sflag [#allocation6], %s187
        %s189 = sand.u32 %s72, 1
        %s190 = smul.addr %s189, 2
        %s191 = scalar_lea.vmem [#allocation5], %s190
        // Predicated region
        $region33: #{tpu_custom_call.1} parent=27 // pred_check
          %p192 = pneg %p85
        $region34: #{tpu_custom_call.1} parent=27 // pred_check_branch
          %194 = sbr.rel (%p192) target = $region36
        $region35: #{tpu_custom_call.1} parent=27 // pred_region
          %195 = dma.done %s188, 32
        $region36: #{tpu_custom_call.1} parent=27 // pred_fallthru
          _
        %s196 = sand.u32 %s44, 1
        %s197 = scalar_lea.sflag [#allocation3], %s196
        %s198 = sand.u32 %s44, 1
        %s199 = smul.addr %s198, 2
        %s200 = scalar_lea.vmem [#allocation2], %s199
        %p201 = pneg %p57
        %p202 = pneg %p54
        %s203 = sand.u32 %s72, 1
        %s204 = scalar_lea.sflag [#allocation6], %s203
        %s205 = sand.u32 %s72, 1
        %s206 = smul.addr %s205, 2
        %s207 = scalar_lea.vmem [#allocation5], %s206
        %p208 = pneg %p85
        %p209 = pneg %p82
        %p210 = pneg %p113
        %p211 = pneg %p110
        %s212 = sand.u32 %s100, 1
        %s213 = scalar_lea.sflag [#allocation4], %s212
        %s214 = sand.u32 %s100, 1
        %s215 = smul.addr %s214, 8
        %s216 = scalar_lea.vmem [#allocation7], %s215
        %v217 = vld [vmem:[%s182] sm:$0x3]
        %v218 = vld [vmem:[%s191] sm:$0x3]
        %v219 = vlog2.pop %v217
        %v220 = vmul.f32 %v219, 0.6931472
        %v221 = vmax.f32 %v220, -100.0
        %v222 = vsub.f32 1.0, %v217
        %v223 = vlog2.pop %v222
        %v224 = vmul.f32 %v223, 0.6931472
        %v225 = vmax.f32 %v224, -100.0
        %v226 = vsub.f32 %v221, %v225
        %v227 = vmul.f32 %v218, %v226
        %v228 = vadd.f32 %v225, %v227
        %v229 = vsub.f32 0.0, %v228
        %vm230 = vcmask 1041408
        %v231 = vsel %vm230, %v229, 0.0
        %232 = vadd.xlane.f32.xlu0 %v231
        %v233 = vpop.xlane.xlu0 %232
        %v234 = vrot.slane %v233, 4
        %v235 = vadd.f32 %v233, %v234
        %v236 = vrot.slane %v235, 2
        %v237 = vadd.f32 %v235, %v236
        %v238 = vrot.slane %v237, 1
        %v239 = vadd.f32 %v237, %v238
        %s240 = vtos %v239
        %v241 = vstv %s240
        %242 = vst [vmem:[%s216] sm:$0xff] %v241
        %s243 = sand.u32 %s100, 1
        %s244 = scalar_lea.sflag [#allocation4], %s243
        %s245 = sand.u32 %s100, 1
        %s246 = smul.addr %s245, 8
        %s247 = scalar_lea.vmem [#allocation7], %s246
        // Predicated region
        $region37: #{tpu_custom_call.1} parent=27 // pred_check
          %p248 = pneg %p110
        $region38: #{tpu_custom_call.1} parent=27 // pred_check_branch
          %250 = sbr.rel (%p248) target = $region40
        $region39: #{tpu_custom_call.1} parent=27 // pred_region
          %s252 = ssub.s32 128, 128
          %253 = vsyncadd %s244, %s252
          %s254 = sadd.s32 %s27, %s26
          %s255 = smul.addr %s254, 128
          %s256 = scalar_lea.hbm %s2, %s255
          %s258 = sshll.u32 %s247, 4
          %s259 = int_to_ptr.vmem [resolvable:$true] %s258
          %261 = dma.vmem_to_hbm [thread:$0]  %s259, 128, %s256, %s244
        $region40: #{tpu_custom_call.1} parent=27 // pred_fallthru
          _
      $region28: #{tpu_custom_call.1} parent=5 // pred_fallthru
        _
      %p262 = scmp.le.s32.totalorder 2, %s17
      // Predicated region
      $region41: #{tpu_custom_call.1} parent=5 // pred_check
        %p263 = pneg %p262
      $region42: #{tpu_custom_call.1} parent=5 // pred_check_branch
        %265 = sbr.rel (%p263) target = $region44
      $region43: #{tpu_custom_call.1} parent=5 // pred_region
        %s266 = ssub.s32 %s17, 2
        // Predicated region
        $region45: #{tpu_custom_call.1} parent=43 // pred_check
          %p267 = pneg %p116
        $region46: #{tpu_custom_call.1} parent=43 // pred_check_branch
          %269 = sbr.rel (%p267) target = $region48
        $region47: #{tpu_custom_call.1} parent=43 // pred_region
          %s270 = sand.u32 %s101, 1
          %s271 = scalar_lea.sflag [#allocation4], %s270
          %s272 = sand.u32 %s101, 1
          %s273 = smul.addr %s272, 8
          %s274 = scalar_lea.vmem [#allocation7], %s273
          %275 = dma.done %s271, 128
        $region48: #{tpu_custom_call.1} parent=43 // pred_fallthru
          _
      $region44: #{tpu_custom_call.1} parent=5 // pred_fallthru
        _
    $region6: #{tpu_custom_call.1} parent=1 // loop_footer
      %s21 = sadd.s32 1, %s17
    $region7: #{tpu_custom_call.1} parent=1 // loop_footer_branch
      %16 = sbr.rel target = $region3
    $region8: #{tpu_custom_call.1} parent=1 // loop_exit
      _
    %276 = vsyncpa [#allocation3], 1
    %s277 = scalar_lea.sflag [#allocation3], 1
    %278 = vsyncpa %s277, 1
    %279 = vsyncpa [#allocation6], 1
    %s280 = scalar_lea.sflag [#allocation6], 1
    %281 = vsyncpa %s280, 1
    %282 = vsyncpa [#allocation4], 1
    %s283 = scalar_lea.sflag [#allocation4], 1
    %284 = vsyncpa %s283, 1

</llo_original>
